<compile_context>
chip_gen: v6e
topology: v6e:2x2x1
jax: 0.10.0
libtpu: 0.0.40
codegen_flags: <defaults>
</compile_context>

<pallas_src>
import jax
import jax.numpy as jnp
from jax.experimental import pallas as pl
from jax.experimental.pallas import tpu as pltpu


def _two_linear_kernel(x_ref, w0t_ref, w1t_ref, o_ref):
    # x_ref:   (B, 2)  activations
    # w0t_ref: (2, 2)  layer0 weight, (in, out) layout
    # w1t_ref: (2, 2)  layer1 weight, (in, out) layout
    # o_ref:   (B, 2)
    x = x_ref[...]
    w0t = w0t_ref[...]
    w1t = w1t_ref[...]

    # layer0: h[b, o] = x[b, 0]*w0t[0, o] + x[b, 1]*w0t[1, o]   (pure VPU FMAs)
    h = x[:, 0:1] * w0t[0:1, :] + x[:, 1:2] * w0t[1:2, :]
    # layer1: y[b, o] = h[b, 0]*w1t[0, o] + h[b, 1]*w1t[1, o]
    y = h[:, 0:1] * w1t[0:1, :] + h[:, 1:2] * w1t[1:2, :]

    o_ref[...] = y.astype(o_ref.dtype)


def custom_model_forward(x, w0, w1):
    """x: (B, 2) float32; w0, w1: (2, 2) float32 in PyTorch (out, in) convention."""
    B, _ = x.shape
    out_f = w1.shape[0]
    # Pure layout plumbing: present weights as (in, out) so the kernel's
    # broadcast-FMAs read contiguous rows. No arithmetic is hoisted out.
    return pl.pallas_call(
        _two_linear_kernel,
        out_shape=jax.ShapeDtypeStruct((B, out_f), x.dtype),
        in_specs=[
            pl.BlockSpec(memory_space=pltpu.MemorySpace.VMEM),
            pl.BlockSpec(memory_space=pltpu.MemorySpace.VMEM),
            pl.BlockSpec(memory_space=pltpu.MemorySpace.VMEM),
        ],
        out_specs=pl.BlockSpec(memory_space=pltpu.MemorySpace.VMEM),
    )(x, w0.T, w1.T)


if __name__ == "__main__":
    key = jax.random.PRNGKey(0)
    k_x, k_w0, k_w1 = jax.random.split(key, 3)

    B = 8               # small batch
    IN = HID = OUT = 2  # nn.Linear(2, 2, bias=False) twice

    x = jax.random.normal(k_x, (B, IN), dtype=jnp.float32)
    # Deterministic "kaiming-uniform-like" init: U(-1/sqrt(in), 1/sqrt(in))
    bound = 1.0 / jnp.sqrt(jnp.float32(IN))
    w0 = jax.random.uniform(k_w0, (HID, IN), dtype=jnp.float32, minval=-bound, maxval=bound)
    w1 = jax.random.uniform(k_w1, (OUT, HID), dtype=jnp.float32, minval=-bound, maxval=bound)

    out = custom_model_forward(x, w0, w1)
    out = jax.block_until_ready(out)

    # Sanity check against plain-JAX reference of the PyTorch semantics.
    ref = (x @ w0.T) @ w1.T
    assert jnp.allclose(out, ref, atol=1e-5, rtol=1e-5), "mismatch vs reference"

    # TODO(synk): the FX quantization prepare/convert machinery in the original
    # file is graph-rewriting tooling, not part of CustomModel.forward; only the
    # float forward pass is implemented here.
    print("KERNEL_OK")
</pallas_src>

<mosaic_0001>
module attributes {stable_mosaic.version = 11 : i64} {
  func.func @_two_linear_kernel(%arg0: memref<8x2xf32, #tpu.memory_space<vmem>>, %arg1: memref<2x2xf32, #tpu.memory_space<vmem>>, %arg2: memref<2x2xf32, #tpu.memory_space<vmem>>, %arg3: memref<8x2xf32, #tpu.memory_space<vmem>>) attributes {dimension_semantics = [], scalar_prefetch = 0 : i64, scratch_operands = 0 : i64, tpu.core_type = #tpu.core_type<tc>} {
    %c0 = arith.constant 0 : index
    %c0_0 = arith.constant 0 : index
    %0 = vector.load %arg0[%c0, %c0_0] : memref<8x2xf32, #tpu.memory_space<vmem>>, vector<8x2xf32>
    %c0_1 = arith.constant 0 : index
    %c0_2 = arith.constant 0 : index
    %1 = vector.load %arg1[%c0_1, %c0_2] : memref<2x2xf32, #tpu.memory_space<vmem>>, vector<2x2xf32>
    %c0_3 = arith.constant 0 : index
    %c0_4 = arith.constant 0 : index
    %2 = vector.load %arg2[%c0_3, %c0_4] : memref<2x2xf32, #tpu.memory_space<vmem>>, vector<2x2xf32>
    %3 = vector.extract_strided_slice %0 {offsets = [0, 0], sizes = [8, 1], strides = [1, 1]} : vector<8x2xf32> to vector<8x1xf32>
    %4 = vector.extract_strided_slice %1 {offsets = [0, 0], sizes = [1, 2], strides = [1, 1]} : vector<2x2xf32> to vector<1x2xf32>
    %5 = vector.broadcast %3 : vector<8x1xf32> to vector<8x2xf32>
    %6 = vector.broadcast %4 : vector<1x2xf32> to vector<8x2xf32>
    %7 = arith.mulf %5, %6 : vector<8x2xf32>
    %8 = vector.extract_strided_slice %0 {offsets = [0, 1], sizes = [8, 1], strides = [1, 1]} : vector<8x2xf32> to vector<8x1xf32>
    %9 = vector.extract_strided_slice %1 {offsets = [1, 0], sizes = [1, 2], strides = [1, 1]} : vector<2x2xf32> to vector<1x2xf32>
    %10 = vector.broadcast %8 : vector<8x1xf32> to vector<8x2xf32>
    %11 = vector.broadcast %9 : vector<1x2xf32> to vector<8x2xf32>
    %12 = arith.mulf %10, %11 : vector<8x2xf32>
    %13 = arith.addf %7, %12 : vector<8x2xf32>
    %14 = vector.extract_strided_slice %13 {offsets = [0, 0], sizes = [8, 1], strides = [1, 1]} : vector<8x2xf32> to vector<8x1xf32>
    %15 = vector.extract_strided_slice %2 {offsets = [0, 0], sizes = [1, 2], strides = [1, 1]} : vector<2x2xf32> to vector<1x2xf32>
    %16 = vector.broadcast %14 : vector<8x1xf32> to vector<8x2xf32>
    %17 = vector.broadcast %15 : vector<1x2xf32> to vector<8x2xf32>
    %18 = arith.mulf %16, %17 : vector<8x2xf32>
    %19 = vector.extract_strided_slice %13 {offsets = [0, 1], sizes = [8, 1], strides = [1, 1]} : vector<8x2xf32> to vector<8x1xf32>
    %20 = vector.extract_strided_slice %2 {offsets = [1, 0], sizes = [1, 2], strides = [1, 1]} : vector<2x2xf32> to vector<1x2xf32>
    %21 = vector.broadcast %19 : vector<8x1xf32> to vector<8x2xf32>
    %22 = vector.broadcast %20 : vector<1x2xf32> to vector<8x2xf32>
    %23 = arith.mulf %21, %22 : vector<8x2xf32>
    %24 = arith.addf %18, %23 : vector<8x2xf32>
    %c0_5 = arith.constant 0 : index
    %c0_6 = arith.constant 0 : index
    %25 = vector.load %arg3[%c0_5, %c0_6] : memref<8x2xf32, #tpu.memory_space<vmem>>, vector<8x2xf32>
    tpu.vector_store %arg3[%c0_5, %c0_6], %24 {strides = array<i32>} : memref<8x2xf32, #tpu.memory_space<vmem>>, vector<8x2xf32>,
    return
  }
}

</mosaic_0001>

<llo_original>
// kernel: tpu_custom_call.1
$region0: #{tpu_custom_call.1}
  #allocation0 [shape = 'u32[]', space=smem, size = 0x4, offset = 0x4, fixed_abs, tag = 'smem constant byte address 0x4 - core index']
  #allocation1 [shape = 'u32[144,128]{1,0:T(1,128)}', space=vmem, size = 0x12000, scoped, tag = 'internal scratch']
  %s0 = inlined_call_operand.vmem [shape: f32[8,2], index: 0, kind: input, shape index: {}]
  %s1 = inlined_call_operand.vmem [shape: f32[2,2], index: 1, kind: input, shape index: {}]
  %s2 = inlined_call_operand.vmem [shape: f32[2,2], index: 2, kind: input, shape index: {}]
  %s3 = inlined_call_operand.vmem [shape: f32[8,2], index: 3, kind: output, shape index: {}]
  %s4 = sld [smem:[#allocation0]]
  $region22: #{tpu_custom_call.1} parent=0
    _
  %s6 = ssub.s32 1, %s4
  %s7 = scalar_select 0, %s6, %s4
  // Predicated region
  $region2: #{tpu_custom_call.1} parent=0 // pred_check
    _
  $region3: #{tpu_custom_call.1} parent=0 // pred_check_branch
    %9 = sbr.rel (0) target = $region5
  $region4: #{tpu_custom_call.1} parent=0 // pred_region
    _
  $region5: #{tpu_custom_call.1} parent=0 // pred_fallthru
    _
  // Predicated region
  $region6: #{tpu_custom_call.1} parent=0 // pred_check
    _
  $region7: #{tpu_custom_call.1} parent=0 // pred_check_branch
    %11 = sbr.rel (0) target = $region9
  $region8: #{tpu_custom_call.1} parent=0 // pred_region
    _
  $region9: #{tpu_custom_call.1} parent=0 // pred_fallthru
    _
  // Predicated region
  $region10: #{tpu_custom_call.1} parent=0 // pred_check
    _
  $region11: #{tpu_custom_call.1} parent=0 // pred_check_branch
    %13 = sbr.rel (0) target = $region13
  $region12: #{tpu_custom_call.1} parent=0 // pred_region
    _
  $region13: #{tpu_custom_call.1} parent=0 // pred_fallthru
    _
  %v14 = vld [vmem:[%s0] sm:$0xff]
  %v15 = vld [vmem:[%s1] sm:$0x3]
  %v16 = vld [vmem:[%s2] sm:$0x3]
  %18 = vset.pattern.permute.xlu0 0
  %19 = vperm.xlu0 %18, %v14
  %v20 = vpop.permute.xlu0 %19
  %v22 = vlaneseq
  %v23 = vshrl.u32 %v22, 7
  %v24 = vsub.s32 0, %v23
  %v25 = vrot.slane %v15, %v24
  %v26 = vmul.f32 %v20, %v25
  %27 = vset.pattern.permute.xlu0 1
  %28 = vperm.xlu0 %27, %v14
  %v29 = vpop.permute.xlu0 %28
  %v31 = vlaneseq
  %v32 = vshrl.u32 %v31, 7
  %v33 = vsub.s32 1, %v32
  %v34 = vrot.slane %v15, %v33
  %v35 = vmul.f32 %v29, %v34
  %v36 = vadd.f32 %v26, %v35
  %38 = vset.pattern.permute.xlu0 0
  %39 = vperm.xlu0 %38, %v36
  %v40 = vpop.permute.xlu0 %39
  %v42 = vlaneseq
  %v43 = vshrl.u32 %v42, 7
  %v44 = vsub.s32 0, %v43
  %v45 = vrot.slane %v16, %v44
  %v46 = vmul.f32 %v40, %v45
  %47 = vset.pattern.permute.xlu0 1
  %48 = vperm.xlu0 %47, %v36
  %v49 = vpop.permute.xlu0 %48
  %v51 = vlaneseq
  %v52 = vshrl.u32 %v51, 7
  %v53 = vsub.s32 1, %v52
  %v54 = vrot.slane %v16, %v53
  %v55 = vmul.f32 %v49, %v54
  %v56 = vadd.f32 %v46, %v55
  %vm57 = vcmask 15360
  %58 = vst.msk [vmem:[%s3] sm:$0xff] %vm57, %v56
  // Predicated region
  $region14: #{tpu_custom_call.1} parent=0 // pred_check
    _
  $region15: #{tpu_custom_call.1} parent=0 // pred_check_branch
    %60 = sbr.rel (0) target = $region17
  $region16: #{tpu_custom_call.1} parent=0 // pred_region
    _
  $region17: #{tpu_custom_call.1} parent=0 // pred_fallthru
    _
  // Predicated region
  $region18: #{tpu_custom_call.1} parent=0 // pred_check
    _
  $region19: #{tpu_custom_call.1} parent=0 // pred_check_branch
    %62 = sbr.rel (0) target = $region21
  $region20: #{tpu_custom_call.1} parent=0 // pred_region
    _
  $region21: #{tpu_custom_call.1} parent=0 // pred_fallthru
    _

</llo_original>
